<compile_context>
chip_gen: v7x
topology: tpu7x:2x2x1
jax: 0.10.0
libtpu: 0.0.40
codegen_flags: <defaults>
</compile_context>

<pallas_src>
import functools

import jax
import jax.numpy as jnp
from jax.experimental import pallas as pl
from jax.experimental.pallas import tpu as pltpu

IN_FEATURES = 28 * 28    # 784
OUT_FEATURES = 10
PAD_OUT = 128            # lane-dense padded output width
DEFAULT_TB = 1024        # batch tile (multiple of 8); bf16 buffers fit the
                         # scoped-VMEM default on v5e/v6e/v7x with 2x buffering


def _round_up(n, m):
    return ((n + m - 1) // m) * m


def linear_kernel(x_ref, wt_ref, b_ref, o_ref):
    # x_ref: (TB, 784) bf16, wt_ref: (784, 128) bf16, b_ref: (1, 128) f32,
    # o_ref: (TB, 128) bf16.  bf16 MXU operands, f32 accumulation.
    acc = jnp.dot(x_ref[...], wt_ref[...], preferred_element_type=jnp.float32)
    o_ref[...] = (acc + b_ref[...]).astype(o_ref.dtype)


@functools.partial(jax.jit, static_argnames=("tb",))
def net_forward(x, wt_pad, bias_pad, *, tb=DEFAULT_TB):
    """Forward pass of Net: y = flatten(x) @ W^T + b.

    x:        (B, 1, 28, 28), ideally already bfloat16; if f32, the cast is
              allowed to fuse into the kernel's input DMA (allow_input_fusion)
              instead of adding a standalone HBM pass.
    wt_pad:   (784, 128) bfloat16 — pre-transposed, lane-padded weight.
    bias_pad: (1, 128)   float32  — lane-padded bias (added after f32 acc).
    returns   (B, 10) float32 logits.
    """
    b = x.shape[0]
    x_flat = x.reshape(b, IN_FEATURES).astype(jnp.bfloat16)

    # Batch tile: multiple of 8, capped at `tb`, and small enough that
    # moderate B still yields >= 2 grid steps (keeps both v7x TCs busy under
    # "parallel" semantics).  Tiny B collapses to an 8-row tile.
    tb_eff = min(tb, _round_up(pl.cdiv(b, 2), 8))
    grid = (pl.cdiv(b, tb_eff),)   # ragged last block handled by Pallas

    out = pl.pallas_call(
        linear_kernel,
        out_shape=jax.ShapeDtypeStruct((b, PAD_OUT), jnp.bfloat16),
        grid_spec=pltpu.PrefetchScalarGridSpec(
            num_scalar_prefetch=0,
            grid=grid,
            in_specs=[
                # x: streamed per batch tile (double-buffered by Pallas).
                pl.BlockSpec((tb_eff, IN_FEATURES), lambda i: (i, 0)),
                # weight: constant block index -> stays resident in VMEM.
                pl.BlockSpec((IN_FEATURES, PAD_OUT), lambda i: (0, 0)),
                # bias: constant block index -> stays resident in VMEM.
                pl.BlockSpec((1, PAD_OUT), lambda i: (0, 0)),
            ],
            out_specs=pl.BlockSpec((tb_eff, PAD_OUT), lambda i: (i, 0)),
        ),
        compiler_params=pltpu.CompilerParams(
            dimension_semantics=("parallel",),
            # Allow a producer cast (f32 -> bf16) of x to fuse into the input
            # DMA instead of materializing an extra HBM pass.
            allow_input_fusion=[True, False, False],
        ),
        cost_estimate=pl.CostEstimate(
            flops=2 * b * IN_FEATURES * PAD_OUT,
            transcendentals=0,
            bytes_accessed=(2 * b * IN_FEATURES          # x (bf16)
                            + 2 * IN_FEATURES * PAD_OUT  # weight (bf16)
                            + 2 * b * PAD_OUT            # out (bf16)
                            + 4 * PAD_OUT),              # bias (f32)
        ),
    )(x_flat, wt_pad, bias_pad)

    # Graph-edge slice/cast to (B, 10) f32 logits.  In a larger graph the
    # consumer should read the padded bf16 (B, 128) slab directly.
    return out[:, :OUT_FEATURES].astype(jnp.float32)


def init_params(key):
    """Deterministic init matching nn.Linear's default (uniform +-1/sqrt(fan_in)).

    Returns PyTorch-layout params: weight (10, 784), bias (10,).
    """
    kw, kb = jax.random.split(key)
    bound = 1.0 / jnp.sqrt(jnp.float32(IN_FEATURES))
    weight = jax.random.uniform(
        kw, (OUT_FEATURES, IN_FEATURES), jnp.float32, -bound, bound)
    bias = jax.random.uniform(
        kb, (OUT_FEATURES,), jnp.float32, -bound, bound)
    return weight, bias


def prepare_params(weight, bias):
    """One-time param prep (outside the hot path).

    Transpose weight to (784, 10), zero-pad to 128 output lanes, store the
    weight in bf16 (MXU operand dtype); keep the bias in f32 so the
    post-accumulation add stays exact.
    """
    wt_pad = jnp.zeros((IN_FEATURES, PAD_OUT), jnp.float32)
    wt_pad = wt_pad.at[:, :OUT_FEATURES].set(weight.T)
    bias_pad = jnp.zeros((1, PAD_OUT), jnp.float32)
    bias_pad = bias_pad.at[:, :OUT_FEATURES].set(bias)
    return wt_pad.astype(jnp.bfloat16), bias_pad


if __name__ == "__main__":
    key = jax.random.PRNGKey(0)
    k_x, k_p = jax.random.split(key)

    batch = 2
    x = jax.random.normal(k_x, (batch, 1, 28, 28), jnp.float32)  # NCHW input
    weight, bias = init_params(k_p)
    wt_pad, bias_pad = prepare_params(weight, bias)

    # Producer hands bf16 activations -> no standalone cast pass in the wrapper.
    x_bf16 = x.astype(jnp.bfloat16)

    y = net_forward(x_bf16, wt_pad, bias_pad)
    y = jax.block_until_ready(y)

    # Sanity check vs. pure-JAX f32 reference (PyTorch semantics:
    # x.view(B, -1) @ W^T + b).  Tolerance loosened for bf16 operands/output.
    y_ref = x.reshape(batch, -1) @ weight.T + bias
    assert y.shape == (batch, OUT_FEATURES)
    assert jnp.allclose(y, y_ref, atol=5e-2, rtol=5e-2), (
        float(jnp.max(jnp.abs(y - y_ref))))

    print("KERNEL_OK")
</pallas_src>

<mosaic_0001>
module attributes {stable_mosaic.version = 11 : i64} {
  func.func @linear_kernel(%arg0: i32, %arg1: memref<8x784xbf16, #tpu.memory_space<vmem>>, %arg2: memref<784x128xbf16, #tpu.memory_space<vmem>>, %arg3: memref<1x128xf32, #tpu.memory_space<vmem>>, %arg4: memref<8x128xbf16, #tpu.memory_space<vmem>>) attributes {dimension_semantics = [#tpu.dimension_semantics<parallel>], iteration_bounds = array<i64: 1>, scalar_prefetch = 0 : i64, scratch_operands = 0 : i64, tpu.core_type = #tpu.core_type<tc>, window_params = [{transform_indices = @transform_0, window_bounds = array<i64: 8, 784>}, {pipeline_mode = #tpu.pipeline_mode<synchronous>, transform_indices = @transform_1, window_bounds = array<i64: 784, 128>}, {pipeline_mode = #tpu.pipeline_mode<synchronous>, transform_indices = @transform_2, window_bounds = array<i64: 1, 128>}, {transform_indices = @transform_3, window_bounds = array<i64: 8, 128>}]} {
    %c0 = arith.constant 0 : index
    %c0_0 = arith.constant 0 : index
    %0 = vector.load %arg1[%c0, %c0_0] : memref<8x784xbf16, #tpu.memory_space<vmem>>, vector<8x784xbf16>
    %c0_1 = arith.constant 0 : index
    %c0_2 = arith.constant 0 : index
    %1 = vector.load %arg2[%c0_1, %c0_2] : memref<784x128xbf16, #tpu.memory_space<vmem>>, vector<784x128xbf16>
    %cst = arith.constant dense<0.000000e+00> : vector<8x128xf32>
    %2 = tpu.matmul %0, %1, %cst {dimension_numbers = #tpu.dot_dimension_numbers<[1], [0], [0], [1], [0, 0, 1, 1], [], []>} : vector<8x784xbf16>, vector<784x128xbf16>, vector<8x128xf32> -> vector<8x128xf32>
    %c0_3 = arith.constant 0 : index
    %c0_4 = arith.constant 0 : index
    %3 = vector.load %arg3[%c0_3, %c0_4] : memref<1x128xf32, #tpu.memory_space<vmem>>, vector<1x128xf32>
    %4 = vector.broadcast %3 : vector<1x128xf32> to vector<8x128xf32>
    %5 = arith.addf %2, %4 : vector<8x128xf32>
    %6 = arith.truncf %5 : vector<8x128xf32> to vector<8x128xbf16>
    %c0_5 = arith.constant 0 : index
    %c0_6 = arith.constant 0 : index
    %7 = vector.load %arg4[%c0_5, %c0_6] : memref<8x128xbf16, #tpu.memory_space<vmem>>, vector<8x128xbf16>
    tpu.vector_store %arg4[%c0_5, %c0_6], %6 {strides = array<i32>} : memref<8x128xbf16, #tpu.memory_space<vmem>>, vector<8x128xbf16>,
    return
  }
  func.func @transform_0(%arg0: i32) -> (i32, i32) {
    %c0_i32 = arith.constant 0 : i32
    %c0_i32_0 = arith.constant 0 : i32
    return %arg0, %c0_i32 : i32, i32
  }
  func.func @transform_1(%arg0: i32) -> (i32, i32) {
    %c0_i32 = arith.constant 0 : i32
    %c0_i32_0 = arith.constant 0 : i32
    %c0_i32_1 = arith.constant 0 : i32
    return %c0_i32, %c0_i32_0 : i32, i32
  }
  func.func @transform_2(%arg0: i32) -> (i32, i32) {
    %c0_i32 = arith.constant 0 : i32
    %c0_i32_0 = arith.constant 0 : i32
    %c0_i32_1 = arith.constant 0 : i32
    return %c0_i32, %c0_i32_0 : i32, i32
  }
  func.func @transform_3(%arg0: i32) -> (i32, i32) {
    %c0_i32 = arith.constant 0 : i32
    %c0_i32_0 = arith.constant 0 : i32
    return %arg0, %c0_i32 : i32, i32
  }
}

</mosaic_0001>

<llo_original>
// kernel: net_forward.1
$region0: #{net_forward.1}
  #allocation0 [shape = 'u32[]', space=smem, size = 0x4, offset = 0x4, fixed_abs, tag = 'smem constant byte address 0x4 - core index']
  #allocation1 [shape = 'u32[144,128]{1,0:T(1,128)}', space=vmem, size = 0x12000, scoped, tag = 'internal scratch']
  %s0 = inlined_call_operand.vmem [shape: bf16[2,784], index: 0, kind: input, shape index: {}]
  %s1 = inlined_call_operand.hbm [shape: bf16[784,128], index: 1, kind: input, shape index: {}]
  %s2 = inlined_call_operand.vmem [shape: f32[1,128], index: 2, kind: input, shape index: {}]
  %s3 = inlined_call_operand.vmem [shape: bf16[2,128], index: 3, kind: output, shape index: {}]
  %s4 = sld [smem:[#allocation0]]
  $region56: #{net_forward.1} parent=0
    _
  %s6 = ssub.s32 1, %s4
  %s7 = scalar_select 0, %s6, %s4
  $region1: #{net_forward.1} parent=0
    #allocation2 [shape = 'u8[200704]{0}', space=vmem, size = 0x31000, scoped, tag = 'input window, operand 1, single buffered']
    #allocation3 [shape = 's32[1]{0}', space=sflag, size = 0x4, scoped, tag = 'scoped memory for net_forward.1']
    #allocation4 [shape = 'u8[2048]{0}', space=vmem, size = 0x800, scoped, tag = 'output window, operand 0, single buffered']
    %8 = vsyncpa [#allocation3], 0
    // Predicated region
    $region2: #{net_forward.1} parent=1 // pred_check
      _
    $region3: #{net_forward.1} parent=1 // pred_check_branch
      %10 = sbr.rel (0) target = $region5
    $region4: #{net_forward.1} parent=1 // pred_region
      _
    $region5: #{net_forward.1} parent=1 // pred_fallthru
      _
    // Predicated region
    $region6: #{net_forward.1} parent=1 // pred_check
      _
    $region7: #{net_forward.1} parent=1 // pred_check_branch
      %12 = sbr.rel (0) target = $region9
    $region8: #{net_forward.1} parent=1 // pred_region
      %s14 = ssub.s32 6272, 6272
      %15 = vsyncadd [#allocation3], %s14
      %s16 = sshll.u32 [#allocation2], 4
      %s17 = int_to_ptr.vmem [resolvable:$true] %s16
      %22 = dma.hbm_to_vmem [thread:$0]  %s1, 6272, %s17, [#allocation3], 64, 64, 4
    $region9: #{net_forward.1} parent=1 // pred_fallthru
      _
    // Predicated region
    $region10: #{net_forward.1} parent=1 // pred_check
      _
    $region11: #{net_forward.1} parent=1 // pred_check_branch
      %24 = sbr.rel (0) target = $region13
    $region12: #{net_forward.1} parent=1 // pred_region
      _
    $region13: #{net_forward.1} parent=1 // pred_fallthru
      _
    // Predicated region
    $region14: #{net_forward.1} parent=1 // pred_check
      _
    $region15: #{net_forward.1} parent=1 // pred_check_branch
      %26 = sbr.rel (0) target = $region17
    $region16: #{net_forward.1} parent=1 // pred_region
      %27 = dma.done [#allocation3], 6272
    $region17: #{net_forward.1} parent=1 // pred_fallthru
      _
    %v29 = vld [vmem:[%s0] sm:$0x7f]
    %v30 = vld [vmem:[%s0 + $0x7] sm:$0x7f]
    %v31 = vld [vmem:[%s0 + $0xe] sm:$0x7f]
    %v32 = vld [vmem:[%s0 + $0x15] sm:$0x7f]
    %v33 = vld [vmem:[#allocation2] sm:$0xf]
    %v34 = vld [vmem:[#allocation2 + $0x4] sm:$0xf]
    %v35 = vld [vmem:[#allocation2 + $0x8] sm:$0xf]
    %v36 = vld [vmem:[#allocation2 + $0xc] sm:$0xf]
    %v37 = vld [vmem:[#allocation2 + $0x10] sm:$0xf]
    %v38 = vld [vmem:[#allocation2 + $0x14] sm:$0xf]
    %v39 = vld [vmem:[#allocation2 + $0x18] sm:$0xf]
    %v40 = vld [vmem:[#allocation2 + $0x1c] sm:$0xf]
    %v41 = vld [vmem:[#allocation2 + $0x20] sm:$0xf]
    %v42 = vld [vmem:[#allocation2 + $0x24] sm:$0xf]
    %v43 = vld [vmem:[#allocation2 + $0x28] sm:$0xf]
    %v44 = vld [vmem:[#allocation2 + $0x2c] sm:$0xf]
    %v45 = vld [vmem:[#allocation2 + $0x30] sm:$0xf]
    %v46 = vld [vmem:[#allocation2 + $0x34] sm:$0xf]
    %v47 = vld [vmem:[#allocation2 + $0x38] sm:$0xf]
    %v48 = vld [vmem:[#allocation2 + $0x3c] sm:$0xf]
    %v49 = vld [vmem:[#allocation2 + $0x40] sm:$0xf]
    %v50 = vld [vmem:[#allocation2 + $0x44] sm:$0xf]
    %v51 = vld [vmem:[#allocation2 + $0x48] sm:$0xf]
    %v52 = vld [vmem:[#allocation2 + $0x4c] sm:$0xf]
    %v53 = vld [vmem:[#allocation2 + $0x50] sm:$0xf]
    %v54 = vld [vmem:[#allocation2 + $0x54] sm:$0xf]
    %v55 = vld [vmem:[#allocation2 + $0x58] sm:$0xf]
    %v56 = vld [vmem:[#allocation2 + $0x5c] sm:$0xf]
    %v57 = vld [vmem:[#allocation2 + $0x60] sm:$0xf]
    %v58 = vld [vmem:[#allocation2 + $0x64] sm:$0xf]
    %v59 = vld [vmem:[#allocation2 + $0x68] sm:$0xf]
    %v60 = vld [vmem:[#allocation2 + $0x6c] sm:$0xf]
    %v61 = vld [vmem:[#allocation2 + $0x70] sm:$0xf]
    %v62 = vld [vmem:[#allocation2 + $0x74] sm:$0xf]
    %v63 = vld [vmem:[#allocation2 + $0x78] sm:$0xf]
    %v64 = vld [vmem:[#allocation2 + $0x7c] sm:$0xf]
    %v65 = vld [vmem:[#allocation2 + $0x80] sm:$0xf]
    %v66 = vld [vmem:[#allocation2 + $0x84] sm:$0xf]
    %v67 = vld [vmem:[#allocation2 + $0x88] sm:$0xf]
    %v68 = vld [vmem:[#allocation2 + $0x8c] sm:$0xf]
    %v69 = vld [vmem:[#allocation2 + $0x90] sm:$0xf]
    %v70 = vld [vmem:[#allocation2 + $0x94] sm:$0xf]
    %v71 = vld [vmem:[#allocation2 + $0x98] sm:$0xf]
    %v72 = vld [vmem:[#allocation2 + $0x9c] sm:$0xf]
    %v73 = vld [vmem:[#allocation2 + $0xa0] sm:$0xf]
    %v74 = vld [vmem:[#allocation2 + $0xa4] sm:$0xf]
    %v75 = vld [vmem:[#allocation2 + $0xa8] sm:$0xf]
    %v76 = vld [vmem:[#allocation2 + $0xac] sm:$0xf]
    %v77 = vld [vmem:[#allocation2 + $0xb0] sm:$0xf]
    %v78 = vld [vmem:[#allocation2 + $0xb4] sm:$0xf]
    %v79 = vld [vmem:[#allocation2 + $0xb8] sm:$0xf]
    %v80 = vld [vmem:[#allocation2 + $0xbc] sm:$0xf]
    %v81 = vld [vmem:[#allocation2 + $0xc0] sm:$0xf]
    %v82 = vld [vmem:[#allocation2 + $0xc4] sm:$0xf]
    %v83 = vld [vmem:[#allocation2 + $0xc8] sm:$0xf]
    %v84 = vld [vmem:[#allocation2 + $0xcc] sm:$0xf]
    %v85 = vld [vmem:[#allocation2 + $0xd0] sm:$0xf]
    %v86 = vld [vmem:[#allocation2 + $0xd4] sm:$0xf]
    %v87 = vld [vmem:[#allocation2 + $0xd8] sm:$0xf]
    %v88 = vld [vmem:[#allocation2 + $0xdc] sm:$0xf]
    %v89 = vld [vmem:[#allocation2 + $0xe0] sm:$0xf]
    %v90 = vld [vmem:[#allocation2 + $0xe4] sm:$0xf]
    %v91 = vld [vmem:[#allocation2 + $0xe8] sm:$0xf]
    %v92 = vld [vmem:[#allocation2 + $0xec] sm:$0xf]
    %v93 = vld [vmem:[#allocation2 + $0xf0] sm:$0xf]
    %v94 = vld [vmem:[#allocation2 + $0xf4] sm:$0xf]
    %v95 = vld [vmem:[#allocation2 + $0xf8] sm:$0xf]
    %v96 = vld [vmem:[#allocation2 + $0xfc] sm:$0xf]
    %v97 = vld [vmem:[#allocation2 + $0x100] sm:$0xf]
    %v98 = vld [vmem:[#allocation2 + $0x104] sm:$0xf]
    %v99 = vld [vmem:[#allocation2 + $0x108] sm:$0xf]
    %v100 = vld [vmem:[#allocation2 + $0x10c] sm:$0xf]
    %v101 = vld [vmem:[#allocation2 + $0x110] sm:$0xf]
    %v102 = vld [vmem:[#allocation2 + $0x114] sm:$0xf]
    %v103 = vld [vmem:[#allocation2 + $0x118] sm:$0xf]
    %v104 = vld [vmem:[#allocation2 + $0x11c] sm:$0xf]
    %v105 = vld [vmem:[#allocation2 + $0x120] sm:$0xf]
    %v106 = vld [vmem:[#allocation2 + $0x124] sm:$0xf]
    %v107 = vld [vmem:[#allocation2 + $0x128] sm:$0xf]
    %v108 = vld [vmem:[#allocation2 + $0x12c] sm:$0xf]
    %v109 = vld [vmem:[#allocation2 + $0x130] sm:$0xf]
    %v110 = vld [vmem:[#allocation2 + $0x134] sm:$0xf]
    %v111 = vld [vmem:[#allocation2 + $0x138] sm:$0xf]
    %v112 = vld [vmem:[#allocation2 + $0x13c] sm:$0xf]
    %v113 = vld [vmem:[#allocation2 + $0x140] sm:$0xf]
    %v114 = vld [vmem:[#allocation2 + $0x144] sm:$0xf]
    %v115 = vld [vmem:[#allocation2 + $0x148] sm:$0xf]
    %v116 = vld [vmem:[#allocation2 + $0x14c] sm:$0xf]
    %v117 = vld [vmem:[#allocation2 + $0x150] sm:$0xf]
    %v118 = vld [vmem:[#allocation2 + $0x154] sm:$0xf]
    %v119 = vld [vmem:[#allocation2 + $0x158] sm:$0xf]
    %v120 = vld [vmem:[#allocation2 + $0x15c] sm:$0xf]
    %v121 = vld [vmem:[#allocation2 + $0x160] sm:$0xf]
    %v122 = vld [vmem:[#allocation2 + $0x164] sm:$0xf]
    %v123 = vld [vmem:[#allocation2 + $0x168] sm:$0xf]
    %v124 = vld [vmem:[#allocation2 + $0x16c] sm:$0xf]
    %v125 = vld [vmem:[#allocation2 + $0x170] sm:$0xf]
    %v126 = vld [vmem:[#allocation2 + $0x174] sm:$0xf]
    %v127 = vld [vmem:[#allocation2 + $0x178] sm:$0xf]
    %v128 = vld [vmem:[#allocation2 + $0x17c] sm:$0xf]
    %v129 = vld [vmem:[#allocation2 + $0x180] sm:$0xf]
    %v130 = vld [vmem:[#allocation2 + $0x184] sm:$0xf]
    %v131 = vld [vmem:[%s2] sm:$0x1]
    %v133 = vlaneseq
    %v134 = vshrl.u32 %v133, 7
    %v135 = vsub.s32 0, %v134
    %v136 = vrot.slane %v131, %v135
    %v142 = vcombine.low %v29, %v30
    %v143 = vcombine.high %v29, %v30
    %v144 = vcombine.low %v31, %v32
    %v145 = vcombine.high %v31, %v32
    %v147 = vunpack.c.l.s4 1966171168
    %v148 = vunpack.c.0.s8 %v147
    %v149 = vlaneseq
    %v150 = vshrl.u32 %v149, 7
    %v151 = vsub.s32 %v148, %v150
    %v152 = vrot.slane %v142, %v151
    %v154 = vunpack.c.l.s4 1966171168
    %v155 = vunpack.c.0.s8 %v154
    %v156 = vlaneseq
    %v157 = vshrl.u32 %v156, 7
    %v158 = vsub.s32 %v155, %v157
    %v159 = vrot.slane %v143, %v158
    %v161 = vunpack.c.l.s4 1966171168
    %v162 = vunpack.c.0.s8 %v161
    %v163 = vlaneseq
    %v164 = vshrl.u32 %v163, 7
    %v165 = vsub.s32 %v162, %v164
    %v166 = vrot.slane %v144, %v165
    %v168 = vunpack.c.l.s4 1966171168
    %v169 = vunpack.c.0.s8 %v168
    %v170 = vlaneseq
    %v171 = vshrl.u32 %v170, 7
    %v172 = vsub.s32 %v169, %v171
    %v173 = vrot.slane %v145, %v172
    %v174 = vcombine.low %v152, %v166
    %v175 = vcombine.high %v152, %v166
    %v176 = vcombine.low %v159, %v173
    %v177 = vcombine.high %v159, %v173
    %v179 = vunpack.c.l.s4 1966171168
    %v180 = vunpack.c.0.s8 %v179
    %v181 = vlaneseq
    %v182 = vshrl.u32 %v181, 7
    %v183 = vsub.s32 %v180, %v182
    %v184 = vrot.slane %v174, %v183
    %v186 = vunpack.c.l.s4 1966171168
    %v187 = vunpack.c.0.s8 %v186
    %v188 = vlaneseq
    %v189 = vshrl.u32 %v188, 7
    %v190 = vsub.s32 %v187, %v189
    %v191 = vrot.slane %v176, %v190
    %v193 = vunpack.c.l.s4 1966171168
    %v194 = vunpack.c.0.s8 %v193
    %v195 = vlaneseq
    %v196 = vshrl.u32 %v195, 7
    %v197 = vsub.s32 %v194, %v196
    %v198 = vrot.slane %v175, %v197
    %v200 = vunpack.c.l.s4 1966171168
    %v201 = vunpack.c.0.s8 %v200
    %v202 = vlaneseq
    %v203 = vshrl.u32 %v202, 7
    %v204 = vsub.s32 %v201, %v203
    %v205 = vrot.slane %v177, %v204
    %v206 = vcombine.high %v184, %v184
    %v207 = vcombine.high %v191, %v191
    %v208 = vcombine.high %v198, %v198
    %v313 = vunpack.c.l.b16 %v33
    %v314 = vunpack.c.l.b16 %v34
    %v315 = vunpack.c.l.b16 %v35
    %v316 = vunpack.c.l.b16 %v36
    %v317 = vunpack.c.l.b16 %v37
    %v318 = vunpack.c.l.b16 %v38
    %v319 = vunpack.c.l.b16 %v39
    %v320 = vunpack.c.l.b16 %v40
    %v321 = vunpack.c.l.b16 %v41
    %v322 = vunpack.c.l.b16 %v42
    %v323 = vunpack.c.l.b16 %v43
    %v324 = vunpack.c.l.b16 %v44
    %v325 = vunpack.c.l.b16 %v45
    %v326 = vunpack.c.l.b16 %v46
    %v327 = vunpack.c.l.b16 %v47
    %v328 = vunpack.c.l.b16 %v48
    %v329 = vunpack.c.l.b16 %v49
    %v330 = vunpack.c.l.b16 %v50
    %v331 = vunpack.c.l.b16 %v51
    %v332 = vunpack.c.l.b16 %v52
    %v333 = vunpack.c.l.b16 %v53
    %v334 = vunpack.c.l.b16 %v54
    %v335 = vunpack.c.l.b16 %v55
    %v336 = vunpack.c.l.b16 %v56
    %v337 = vunpack.c.l.b16 %v57
    %v338 = vunpack.c.l.b16 %v58
    %v339 = vunpack.c.l.b16 %v59
    %v340 = vunpack.c.l.b16 %v60
    %v341 = vunpack.c.l.b16 %v61
    %v342 = vunpack.c.l.b16 %v62
    %v343 = vunpack.c.l.b16 %v63
    %v344 = vunpack.c.l.b16 %v64
    %v345 = vunpack.c.l.b16 %v65
    %v346 = vunpack.c.l.b16 %v66
    %v347 = vunpack.c.l.b16 %v67
    %v348 = vunpack.c.l.b16 %v68
    %v349 = vunpack.c.l.b16 %v69
    %v350 = vunpack.c.l.b16 %v70
    %v351 = vunpack.c.l.b16 %v71
    %v352 = vunpack.c.l.b16 %v72
    %v353 = vunpack.c.l.b16 %v73
    %v354 = vunpack.c.l.b16 %v74
    %v355 = vunpack.c.l.b16 %v75
    %v356 = vunpack.c.l.b16 %v76
    %v357 = vunpack.c.l.b16 %v77
    %v358 = vunpack.c.l.b16 %v78
    %v359 = vunpack.c.l.b16 %v79
    %v360 = vunpack.c.l.b16 %v80
    %v361 = vunpack.c.l.b16 %v81
    %v362 = vunpack.c.l.b16 %v82
    %v363 = vunpack.c.l.b16 %v83
    %v364 = vunpack.c.l.b16 %v84
    %v365 = vunpack.c.l.b16 %v85
    %v366 = vunpack.c.l.b16 %v86
    %v367 = vunpack.c.l.b16 %v87
    %v368 = vunpack.c.l.b16 %v88
    %v369 = vunpack.c.l.b16 %v89
    %v370 = vunpack.c.l.b16 %v90
    %v371 = vunpack.c.l.b16 %v91
    %v372 = vunpack.c.l.b16 %v92
    %v373 = vunpack.c.l.b16 %v93
    %v374 = vunpack.c.l.b16 %v94
    %v375 = vunpack.c.l.b16 %v95
    %v376 = vunpack.c.l.b16 %v96
    %v377 = vunpack.c.l.b16 %v97
    %v378 = vunpack.c.l.b16 %v98
    %v379 = vunpack.c.l.b16 %v99
    %v380 = vunpack.c.l.b16 %v100
    %v381 = vunpack.c.l.b16 %v101
    %v382 = vunpack.c.l.b16 %v102
    %v383 = vunpack.c.l.b16 %v103
    %v384 = vunpack.c.l.b16 %v104
    %v385 = vunpack.c.l.b16 %v105
    %v386 = vunpack.c.l.b16 %v106
    %v387 = vunpack.c.l.b16 %v107
    %v388 = vunpack.c.l.b16 %v108
    %v389 = vunpack.c.l.b16 %v109
    %v390 = vunpack.c.l.b16 %v110
    %v391 = vunpack.c.l.b16 %v111
    %v392 = vunpack.c.l.b16 %v112
    %v393 = vunpack.c.l.b16 %v113
    %v394 = vunpack.c.l.b16 %v114
    %v395 = vunpack.c.l.b16 %v115
    %v396 = vunpack.c.l.b16 %v116
    %v397 = vunpack.c.l.b16 %v117
    %v398 = vunpack.c.l.b16 %v118
    %v399 = vunpack.c.l.b16 %v119
    %v400 = vunpack.c.l.b16 %v120
    %v401 = vunpack.c.l.b16 %v121
    %v402 = vunpack.c.l.b16 %v122
    %v403 = vunpack.c.l.b16 %v123
    %v404 = vunpack.c.l.b16 %v124
    %v405 = vunpack.c.l.b16 %v125
    %v406 = vunpack.c.l.b16 %v126
    %v407 = vunpack.c.l.b16 %v127
    %v408 = vunpack.c.l.b16 %v128
    %v409 = vunpack.c.l.b16 %v129
    %v410 = vunpack.c.l.b16 %v130
    %v411 = vpack.c.b16 %v314, %v313
    %v412 = vpack.c.b16 %v316, %v315
    %v413 = vpack.c.b16 %v318, %v317
    %v414 = vpack.c.b16 %v320, %v319
    %v415 = vpack.c.b16 %v322, %v321
    %v416 = vpack.c.b16 %v324, %v323
    %v417 = vpack.c.b16 %v326, %v325
    %v418 = vpack.c.b16 %v328, %v327
    %v419 = vpack.c.b16 %v330, %v329
    %v420 = vpack.c.b16 %v332, %v331
    %v421 = vpack.c.b16 %v334, %v333
    %v422 = vpack.c.b16 %v336, %v335
    %v423 = vpack.c.b16 %v338, %v337
    %v424 = vpack.c.b16 %v340, %v339
    %v425 = vpack.c.b16 %v342, %v341
    %v426 = vpack.c.b16 %v344, %v343
    %v427 = vpack.c.b16 %v346, %v345
    %v428 = vpack.c.b16 %v348, %v347
    %v429 = vpack.c.b16 %v350, %v349
    %v430 = vpack.c.b16 %v352, %v351
    %v431 = vpack.c.b16 %v354, %v353
    %v432 = vpack.c.b16 %v356, %v355
    %v433 = vpack.c.b16 %v358, %v357
    %v434 = vpack.c.b16 %v360, %v359
    %v435 = vpack.c.b16 %v362, %v361
    %v436 = vpack.c.b16 %v364, %v363
    %v437 = vpack.c.b16 %v366, %v365
    %v438 = vpack.c.b16 %v368, %v367
    %v439 = vpack.c.b16 %v370, %v369
    %v440 = vpack.c.b16 %v372, %v371
    %v441 = vpack.c.b16 %v374, %v373
    %v442 = vpack.c.b16 %v376, %v375
    %v443 = vpack.c.b16 %v378, %v377
    %v444 = vpack.c.b16 %v380, %v379
    %v445 = vpack.c.b16 %v382, %v381
    %v446 = vpack.c.b16 %v384, %v383
    %v447 = vpack.c.b16 %v386, %v385
    %v448 = vpack.c.b16 %v388, %v387
    %v449 = vpack.c.b16 %v390, %v389
    %v450 = vpack.c.b16 %v392, %v391
    %v451 = vpack.c.b16 %v394, %v393
    %v452 = vpack.c.b16 %v396, %v395
    %v453 = vpack.c.b16 %v398, %v397
    %v454 = vpack.c.b16 %v400, %v399
    %v455 = vpack.c.b16 %v402, %v401
    %v456 = vpack.c.b16 %v404, %v403
    %v457 = vpack.c.b16 %v406, %v405
    %v458 = vpack.c.b16 %v408, %v407
    %v459 = vpack.c.b16 %v410, %v409
    %vm509 = vcmask 130048
    %v511 = vsel %vm509, %v207, 0
    %513 = vmatprep.subr.bf16.mxu0 0
    %514 = vmatpush1.bf16.msra.mxu0 %v411
    %515 = vmatprep.subr.bf16.mxu0 0
    %516 = vmatpush1.bf16.msra.mxu0 %v412
    %517 = vmatprep.subr.bf16.mxu0 0
    %518 = vmatpush1.bf16.msra.mxu0 %v413
    %519 = vmatprep.subr.bf16.mxu0 0
    %520 = vmatpush1.bf16.msra.mxu0 %v414
    %521 = vmatprep.subr.bf16.mxu0 0
    %522 = vmatpush1.bf16.msra.mxu0 %v415
    %523 = vmatprep.subr.bf16.mxu0 0
    %524 = vmatpush1.bf16.msra.mxu0 %v416
    %525 = vmatprep.subr.bf16.mxu0 0
    %526 = vmatpush1.bf16.msra.mxu0 %v417
    %527 = vmatprep.subr.bf16.mxu0 0
    %528 = vmatpush1.bf16.msra.mxu0 %v418
    %529 = vmatprep.subr.bf16.mxu0 0
    %530 = vmatpush1.bf16.msra.mxu0 %v419
    %531 = vmatprep.subr.bf16.mxu0 0
    %532 = vmatpush1.bf16.msra.mxu0 %v420
    %533 = vmatprep.subr.bf16.mxu0 0
    %534 = vmatpush1.bf16.msra.mxu0 %v421
    %535 = vmatprep.subr.bf16.mxu0 0
    %536 = vmatpush1.bf16.msra.mxu0 %v422
    %537 = vmatprep.subr.bf16.mxu0 0
    %538 = vmatpush1.bf16.msra.mxu0 %v423
    %539 = vmatprep.subr.bf16.mxu0 0
    %540 = vmatpush1.bf16.msra.mxu0 %v424
    %541 = vmatprep.subr.bf16.mxu0 0
    %542 = vmatpush1.bf16.msra.mxu0 %v425
    %543 = vmatprep.subr.bf16.mxu0 0
    %544 = vmatpush1.bf16.msra.mxu0 %v426
    %545 = vmatprep.mubr.bf16.mxu0 %v198
    %546 = vmatmul.mubr.bf16.gmra.mrb[0].mxu0 %v184
    %v547 = vpop.f32.mrb[0].mxu0
    %v548 = vadd.f32 %v136, %v547
    %v549 = vpop.f32.mrb[0].mxu0
    %v550 = vpop.f32.mrb[0].mxu0
    %v551 = vpop.f32.mrb[0].mxu0
    %552 = vdwg.mxu0
    %553 = vmatprep.subr.bf16.mxu0 0
    %554 = vmatpush1.bf16.msra.mxu0 %v427
    %555 = vmatprep.subr.bf16.mxu0 0
    %556 = vmatpush1.bf16.msra.mxu0 %v428
    %557 = vmatprep.subr.bf16.mxu0 0
    %558 = vmatpush1.bf16.msra.mxu0 %v429
    %559 = vmatprep.subr.bf16.mxu0 0
    %560 = vmatpush1.bf16.msra.mxu0 %v430
    %561 = vmatprep.subr.bf16.mxu0 0
    %562 = vmatpush1.bf16.msra.mxu0 %v431
    %563 = vmatprep.subr.bf16.mxu0 0
    %564 = vmatpush1.bf16.msra.mxu0 %v432
    %565 = vmatprep.subr.bf16.mxu0 0
    %566 = vmatpush1.bf16.msra.mxu0 %v433
    %567 = vmatprep.subr.bf16.mxu0 0
    %568 = vmatpush1.bf16.msra.mxu0 %v434
    %569 = vmatprep.subr.bf16.mxu0 0
    %570 = vmatpush1.bf16.msra.mxu0 %v435
    %571 = vmatprep.subr.bf16.mxu0 0
    %572 = vmatpush1.bf16.msra.mxu0 %v436
    %573 = vmatprep.subr.bf16.mxu0 0
    %574 = vmatpush1.bf16.msra.mxu0 %v437
    %575 = vmatprep.subr.bf16.mxu0 0
    %576 = vmatpush1.bf16.msra.mxu0 %v438
    %577 = vmatprep.subr.bf16.mxu0 0
    %578 = vmatpush1.bf16.msra.mxu0 %v439
    %579 = vmatprep.subr.bf16.mxu0 0
    %580 = vmatpush1.bf16.msra.mxu0 %v440
    %581 = vmatprep.subr.bf16.mxu0 0
    %582 = vmatpush1.bf16.msra.mxu0 %v441
    %583 = vmatprep.subr.bf16.mxu0 0
    %584 = vmatpush1.bf16.msra.mxu0 %v442
    %585 = vmatprep.mubr.bf16.mxu0 %v208
    %586 = vmatmul.mubr.bf16.gmra.mrb[0].mxu0 %v206
    %v587 = vpop.f32.mrb[0].mxu0
    %v588 = vadd.f32 %v548, %v587
    %v589 = vpop.f32.mrb[0].mxu0
    %v590 = vpop.f32.mrb[0].mxu0
    %v591 = vpop.f32.mrb[0].mxu0
    %592 = vdwg.mxu0
    %593 = vmatprep.subr.bf16.mxu0 0
    %594 = vmatpush1.bf16.msra.mxu0 %v443
    %595 = vmatprep.subr.bf16.mxu0 0
    %596 = vmatpush1.bf16.msra.mxu0 %v444
    %597 = vmatprep.subr.bf16.mxu0 0
    %598 = vmatpush1.bf16.msra.mxu0 %v445
    %599 = vmatprep.subr.bf16.mxu0 0
    %600 = vmatpush1.bf16.msra.mxu0 %v446
    %601 = vmatprep.subr.bf16.mxu0 0
    %602 = vmatpush1.bf16.msra.mxu0 %v447
    %603 = vmatprep.subr.bf16.mxu0 0
    %604 = vmatpush1.bf16.msra.mxu0 %v448
    %605 = vmatprep.subr.bf16.mxu0 0
    %606 = vmatpush1.bf16.msra.mxu0 %v449
    %607 = vmatprep.subr.bf16.mxu0 0
    %608 = vmatpush1.bf16.msra.mxu0 %v450
    %609 = vmatprep.subr.bf16.mxu0 0
    %610 = vmatpush1.bf16.msra.mxu0 %v451
    %611 = vmatprep.subr.bf16.mxu0 0
    %612 = vmatpush1.bf16.msra.mxu0 %v452
    %613 = vmatprep.subr.bf16.mxu0 0
    %614 = vmatpush1.bf16.msra.mxu0 %v453
    %615 = vmatprep.subr.bf16.mxu0 0
    %616 = vmatpush1.bf16.msra.mxu0 %v454
    %617 = vmatprep.subr.bf16.mxu0 0
    %618 = vmatpush1.bf16.msra.mxu0 %v455
    %619 = vmatprep.subr.bf16.mxu0 0
    %620 = vmatpush1.bf16.msra.mxu0 %v456
    %621 = vmatprep.subr.bf16.mxu0 0
    %622 = vmatpush1.bf16.msra.mxu0 %v457
    %623 = vmatprep.subr.bf16.mxu0 0
    %624 = vmatpush1.bf16.msra.mxu0 %v458
    %625 = vmatprep.mubr.bf16.mxu0 %v205
    %626 = vmatmul.mubr.bf16.gmra.mrb[0].mxu0 %v191
    %v627 = vpop.f32.mrb[0].mxu0
    %v628 = vadd.f32 %v588, %v627
    %v629 = vpop.f32.mrb[0].mxu0
    %v630 = vpop.f32.mrb[0].mxu0
    %v631 = vpop.f32.mrb[0].mxu0
    %632 = vdwg.mxu0
    %633 = vmatprep.subr.bf16.mxu0 0
    %634 = vmatpush1.bf16.msra.mxu0 %v459
    %635 = vmatprep.subr.bf16.mxu0 0
    %636 = vmatpush1.bf16.msra.mxu0 0
    %637 = vmatprep.subr.bf16.mxu0 0
    %638 = vmatpush1.bf16.msra.mxu0 0
    %639 = vmatprep.subr.bf16.mxu0 0
    %640 = vmatpush1.bf16.msra.mxu0 0
    %641 = vmatprep.subr.bf16.mxu0 0
    %642 = vmatpush1.bf16.msra.mxu0 0
    %643 = vmatprep.subr.bf16.mxu0 0
    %644 = vmatpush1.bf16.msra.mxu0 0
    %645 = vmatprep.subr.bf16.mxu0 0
    %646 = vmatpush1.bf16.msra.mxu0 0
    %647 = vmatprep.subr.bf16.mxu0 0
    %648 = vmatpush1.bf16.msra.mxu0 0
    %649 = vmatprep.subr.bf16.mxu0 0
    %650 = vmatpush1.bf16.msra.mxu0 0
    %651 = vmatprep.subr.bf16.mxu0 0
    %652 = vmatpush1.bf16.msra.mxu0 0
    %653 = vmatprep.subr.bf16.mxu0 0
    %654 = vmatpush1.bf16.msra.mxu0 0
    %655 = vmatprep.subr.bf16.mxu0 0
    %656 = vmatpush1.bf16.msra.mxu0 0
    %657 = vmatprep.subr.bf16.mxu0 0
    %658 = vmatpush1.bf16.msra.mxu0 0
    %659 = vmatprep.subr.bf16.mxu0 0
    %660 = vmatpush1.bf16.msra.mxu0 0
    %661 = vmatprep.subr.bf16.mxu0 0
    %662 = vmatpush1.bf16.msra.mxu0 0
    %663 = vmatprep.subr.bf16.mxu0 0
    %664 = vmatpush1.bf16.msra.mxu0 0
    %665 = vmatprep.mubr.bf16.mxu0 0
    %666 = vmatmul.mubr.bf16.gmra.mrb[0].mxu0 %v511
    %v667 = vpop.f32.mrb[0].mxu0
    %v668 = vadd.f32 %v628, %v667
    %v669 = vpop.f32.mrb[0].mxu0
    %v670 = vpop.f32.mrb[0].mxu0
    %v671 = vpop.f32.mrb[0].mxu0
    %672 = vdwg.mxu0
    %v673 = vpack.c.bf16 %v668, %v668
    %v676 = vunpack.c.l.s4 1966171168
    %v677 = vunpack.c.0.s8 %v676
    %v678 = vlaneseq
    %v679 = vshrl.u32 %v678, 7
    %v680 = vsub.s32 %v677, %v679
    %v681 = vrot.slane %v673, %v680
    %v682 = vcombine.high %v681, %v681
    %v684 = vunpack.c.l.s4 1966171168
    %v685 = vunpack.c.0.s8 %v684
    %v686 = vlaneseq
    %v687 = vshrl.u32 %v686, 7
    %v688 = vsub.s32 %v685, %v687
    %v689 = vrot.slane %v681, %v688
    %v691 = vunpack.c.l.s4 1966171168
    %v692 = vunpack.c.0.s8 %v691
    %v693 = vlaneseq
    %v694 = vshrl.u32 %v693, 7
    %v695 = vsub.s32 %v692, %v694
    %v696 = vrot.slane %v682, %v695
    %v697 = vcombine.high %v689, %v689
    %v698 = vcombine.high %v696, %v696
    %703 = vst [vmem:[#allocation4] sm:$0x1] %v689
    %704 = vst [vmem:[#allocation4 + $0x1] sm:$0x1] %v696
    %705 = vst [vmem:[#allocation4 + $0x2] sm:$0x1] %v697
    %706 = vst [vmem:[#allocation4 + $0x3] sm:$0x1] %v698
    // Predicated region
    $region18: #{net_forward.1} parent=1 // pred_check
      _
    $region19: #{net_forward.1} parent=1 // pred_check_branch
      %708 = sbr.rel (0) target = $region21
    $region20: #{net_forward.1} parent=1 // pred_region
      // Predicated region
      $region22: #{net_forward.1} parent=20 // pred_check
        _
      $region23: #{net_forward.1} parent=20 // pred_check_branch
        %710 = sbr.rel (0) target = $region25
      $region24: #{net_forward.1} parent=20 // pred_region
        // Predicated region
        $region26: #{net_forward.1} parent=24 // pred_check
          _
        $region27: #{net_forward.1} parent=24 // pred_check_branch
          %712 = sbr.rel target = $region29
        $region28: #{net_forward.1} parent=24 // pred_region
          // Predicated region
          $region41: #{net_forward.1} parent=28 // pred_check
            _
          $region42: #{net_forward.1} parent=28 // pred_check_branch
            %727 = sbr.rel (0) target = $region44
          $region43: #{net_forward.1} parent=28 // pred_region
            loop: start=0, step=1, limit=1
            $region45: #{net_forward.1} parent=43 // loop_pre_header
              _
            $region46: #{net_forward.1} parent=43 // loop_header
              %s730 = sphi 0, %s734
              %p731 = scmp.ge.s32.totalorder %s730, 1
              %s735 = sphi [#allocation4], [#allocation4]
              %s736 = sphi %s3, %s3
            $region47: #{net_forward.1} parent=43 // loop_header_branch
              %733 = sbr.rel (%p731) target = $region51
            $region48: #{net_forward.1} parent=43 // loop_body
              %v737 = vld [vmem:[%s735] sm:$0x1]
              %738 = vst [vmem:[%s736] sm:$0x1] %v737
            $region49: #{net_forward.1} parent=43 // loop_footer
              %s734 = sadd.s32 1, %s730
            $region50: #{net_forward.1} parent=43 // loop_footer_branch
              %729 = sbr.rel target = $region46
            $region51: #{net_forward.1} parent=43 // loop_exit
              _
          $region44: #{net_forward.1} parent=28 // pred_fallthru
            _
        $region29: #{net_forward.1} parent=24 // pred_fallthru
          _
        // Predicated region
        $region30: #{net_forward.1} parent=24 // pred_check
          _
        $region31: #{net_forward.1} parent=24 // pred_check_branch
          %714 = sbr.rel (0) target = $region33
        $region32: #{net_forward.1} parent=24 // pred_region
          loop: start=0, step=1, limit=1
          $region34: #{net_forward.1} parent=32 // loop_pre_header
            _
          $region35: #{net_forward.1} parent=32 // loop_header
            %s717 = sphi 0, %s721
            %p718 = scmp.ge.s32.totalorder %s717, 1
            %s722 = sphi [#allocation4], [#allocation4]
            %s723 = sphi %s3, %s3
          $region36: #{net_forward.1} parent=32 // loop_header_branch
            %720 = sbr.rel (%p718) target = $region40
          $region37: #{net_forward.1} parent=32 // loop_body
            %v724 = vld [vmem:[%s722] sm:$0x1]
            %725 = vst [vmem:[%s723] sm:$0x1] %v724
          $region38: #{net_forward.1} parent=32 // loop_footer
            %s721 = sadd.s32 1, %s717
          $region39: #{net_forward.1} parent=32 // loop_footer_branch
            %716 = sbr.rel target = $region35
          $region40: #{net_forward.1} parent=32 // loop_exit
            _
        $region33: #{net_forward.1} parent=24 // pred_fallthru
          _
      $region25: #{net_forward.1} parent=20 // pred_fallthru
        _
      %739 = vnop
    $region21: #{net_forward.1} parent=1 // pred_fallthru
      _
    // Predicated region
    $region52: #{net_forward.1} parent=1 // pred_check
      _
    $region53: #{net_forward.1} parent=1 // pred_check_branch
      %741 = sbr.rel (0) target = $region55
    $region54: #{net_forward.1} parent=1 // pred_region
      _
    $region55: #{net_forward.1} parent=1 // pred_fallthru
      _
    %742 = vsyncpa [#allocation3], 1

</llo_original>
